<compile_context>
chip_gen: v5e
topology: v5e:2x2
jax: 0.10.0
libtpu: 0.0.40
codegen_flags: <defaults>
</compile_context>

<pallas_src>
import jax
import jax.numpy as jnp
from jax import lax
from jax.experimental import pallas as pl
from jax.experimental.pallas import tpu as pltpu


# ----------------------------- window construction (glue) -------------------
def gaussian_1d(window_size: int, sigma: float) -> jnp.ndarray:
    xs = jnp.arange(window_size, dtype=jnp.float32)
    g = jnp.exp(-((xs - window_size // 2) ** 2) / (2.0 * sigma ** 2))
    return g / jnp.sum(g)


def create_window(window_size: int, channel: int) -> jnp.ndarray:
    g = gaussian_1d(window_size, 1.5)
    w2 = jnp.outer(g, g).astype(jnp.float32)
    return jnp.broadcast_to(w2[None, None], (channel, 1, window_size, window_size))


def create_window_uniform(window_size: int, channel: int) -> jnp.ndarray:
    c = 1.0 / (window_size * window_size)
    return jnp.full((channel, 1, window_size, window_size), c, dtype=jnp.float32)


# ----------------------------- band (Toeplitz) matrices ----------------------
def _band_matrix(taps: jnp.ndarray, in_len: int, out_len: int, pad: int,
                 K: int) -> jnp.ndarray:
    """B[i, o] = taps[i - o + pad] if that index is in [0, K) else 0.

    X @ B  (or  B.T @ X) is exactly a 1-D cross-correlation of X with `taps`
    using zero padding `pad`, i.e. what F.conv2d does along one axis.
    """
    i = jnp.arange(in_len, dtype=jnp.int32)[:, None]
    o = jnp.arange(out_len, dtype=jnp.int32)[None, :]
    k = i - o + pad
    valid = (k >= 0) & (k < K)
    return jnp.where(valid, taps[jnp.clip(k, 0, K - 1)], 0.0).astype(jnp.float32)


def _round_up(x: int, m: int) -> int:
    return (x + m - 1) // m * m


# ----------------------------- Pallas kernel --------------------------------
def _ssim_kernel(bw_ref, bht_ref, img1_ref, img2_ref, o_ref):
    """Single step: whole batch, all channels, all five statistics fused."""
    C1 = 0.01 ** 2
    C2 = 0.03 ** 2

    x1 = img1_ref[...].astype(jnp.float32)        # (H, N*C*W), lane-dense
    x2 = img2_ref[...].astype(jnp.float32)
    H, L = x1.shape
    Hp = bht_ref.shape[1] // 5                    # per-stat input row stride
    Hop = bht_ref.shape[0] // 5                   # per-stat output row stride (8-aligned)
    Ho = o_ref.shape[0]

    # Five statistics stacked along sublanes (each block Hp rows).
    stats = [x1, x2, x1 * x1, x2 * x2, x1 * x2]
    if Hp != H:                                   # static branch; no-op when H % 8 == 0
        z = jnp.zeros((Hp - H, L), jnp.float32)
        stats = [jnp.concatenate([s, z], axis=0) for s in stats]
    S = jnp.concatenate(stats, axis=0)            # (5*Hp, L)

    # Two fused MXU matmuls: horizontal then vertical banded conv.
    T = jnp.dot(S, bw_ref[...], preferred_element_type=jnp.float32)    # (5*Hp, Lo)
    U = jnp.dot(bht_ref[...], T, preferred_element_type=jnp.float32)   # (5*Hop, Lo)

    # 8-aligned sublane slices per statistic, each (Ho, Lo).
    mu1 = U[0 * Hop:0 * Hop + Ho]
    mu2 = U[1 * Hop:1 * Hop + Ho]
    s11 = U[2 * Hop:2 * Hop + Ho]
    s22 = U[3 * Hop:3 * Hop + Ho]
    s12 = U[4 * Hop:4 * Hop + Ho]

    mu1_sq = mu1 * mu1
    mu2_sq = mu2 * mu2
    mu12 = mu1 * mu2
    sigma1_sq = s11 - mu1_sq
    sigma2_sq = s22 - mu2_sq
    sigma12 = s12 - mu12

    num = (2.0 * mu12 + C1) * (2.0 * sigma12 + C2)
    den = (mu1_sq + mu2_sq + C1) * (sigma1_sq + sigma2_sq + C2)
    # Reciprocal runs on the EUP slot; approx=True would be cheaper still but
    # might not meet the 2e-5 reference tolerance, so keep the exact variant.
    o_ref[...] = num * pl.reciprocal(den, approx=False)


# ----------------------------- wrapper ---------------------------------------
def ssim_pallas(img1, img2, window, window_size, size_average=True):
    """Returns mean SSIM (scalar if size_average else per-batch vector)."""
    N, C, H, W = img1.shape
    K = window.shape[-1]
    pad = window_size // 2
    Ho = H + 2 * pad - K + 1
    Wo = W + 2 * pad - K + 1
    Hp = _round_up(H, 8)
    Hop = _round_up(Ho, 8)

    # Rank-1 (separable) factorization of the 2-D window via its CENTER
    # row/column (robust even if corner taps underflow). Exact for the uniform
    # and Gaussian windows this module constructs (w2d = outer(g, g)).
    w2d = window[0, 0].astype(jnp.float32)        # identical across channels
    kc = K // 2
    g_w = w2d[kc, :]
    g_h = w2d[:, kc] / w2d[kc, kc]
    try:                                          # concrete-only sanity check
        import numpy as np
        w2d_np = np.asarray(w2d)                  # raises if traced
        recon = np.outer(np.asarray(g_h), np.asarray(g_w))
        assert np.allclose(recon, w2d_np, rtol=1e-5, atol=1e-7), (
            "SSIM window is not separable; band factorization would be wrong.")
    except jax.errors.ConcretizationTypeError:
        pass                                      # traced window: skip check

    Bw = _band_matrix(g_w, W, Wo, pad, K)         # (W,  Wo)  horizontal taps + pad
    BhT = _band_matrix(g_h, H, Ho, pad, K).T      # (Ho, H)   vertical taps + pad

    # Compile-time block-diagonal band matrices:
    #  * BwBlk : one Bw block per (batch, channel) lane group.
    #  * BhTBlk: one BhT block per statistic; output rows strided by Hop so the
    #    per-stat slices in the kernel are 8-sublane aligned.
    BwBlk = jnp.kron(jnp.eye(N * C, dtype=jnp.float32), Bw)   # (N*C*W, N*C*Wo)
    BhTBlk = jnp.zeros((5 * Hop, 5 * Hp), jnp.float32)
    for s in range(5):
        BhTBlk = BhTBlk.at[s * Hop:s * Hop + Ho, s * Hp:s * Hp + H].set(BhT)

    # Lane-dense image layout: (N, C, H, W) -> (H, N*C*W).  Pure layout
    # plumbing in the wrapper (tiny at these shapes).
    def to_lanes(x):
        return jnp.transpose(x, (2, 0, 1, 3)).reshape(H, N * C * W)

    x1 = to_lanes(img1)
    x2 = to_lanes(img2)
    Lo = N * C * Wo

    ssim_map = pl.pallas_call(
        _ssim_kernel,
        out_shape=jax.ShapeDtypeStruct((Ho, Lo), jnp.float32),
        grid_spec=pltpu.PrefetchScalarGridSpec(
            num_scalar_prefetch=0,
            grid=(1,),                            # whole problem in one step
            in_specs=[
                pl.BlockSpec((N * C * W, Lo), lambda i: (0, 0)),      # BwBlk
                pl.BlockSpec((5 * Hop, 5 * Hp), lambda i: (0, 0)),    # BhTBlk
                pl.BlockSpec((H, N * C * W), lambda i: (0, 0)),       # img1
                pl.BlockSpec((H, N * C * W), lambda i: (0, 0)),       # img2
            ],
            out_specs=pl.BlockSpec((Ho, Lo), lambda i: (0, 0)),
        ),
        compiler_params=pltpu.CompilerParams(
            dimension_semantics=("arbitrary",)),
    )(BwBlk, BhTBlk, x1, x2)

    # Map lanes are ordered (batch, channel, Wo); final (tiny) mean glue-side.
    m = ssim_map.reshape(Ho, N, C * Wo)
    if size_average:
        return jnp.mean(m)
    else:
        return jnp.mean(m, axis=(0, 2))           # per-batch mean over (C,Ho,Wo)


# ----------------------------- module wrapper --------------------------------
class SSIM:
    """Mirrors the PyTorch SSIM module (forward returns 1 - ssim)."""

    def __init__(self, scales, window_size=8, n_channel=3, size_average=True):
        self.scales = scales
        self.cur_scale = self.scales[0]
        self.window_size = self.cur_scale * 2       # used for padding
        self.size_average = size_average
        self.channel = n_channel
        # deterministic init, exactly as in __init__ (uniform 8x8 window)
        self.window = create_window_uniform(window_size, self.channel)

    def __call__(self, img1, img2):
        _, channel, _, _ = img1.shape
        if channel == self.channel and self.window.dtype == img1.dtype:
            window = self.window
        else:
            window = create_window(self.window_size, channel).astype(img1.dtype)
            self.window = window
            self.channel = channel
        return 1.0 - ssim_pallas(img1, img2, window, self.window_size,
                                 self.size_average)


# ----------------------------- pure-JAX reference ----------------------------
def _ssim_ref(img1, img2, window, window_size, size_average=True):
    pad = window_size // 2
    C = img1.shape[1]
    dn = ("NCHW", "OIHW", "NCHW")
    conv = lambda x: lax.conv_general_dilated(
        x, window, (1, 1), [(pad, pad), (pad, pad)],
        dimension_numbers=dn, feature_group_count=C)
    mu1, mu2 = conv(img1), conv(img2)
    mu1_sq, mu2_sq, mu12 = mu1 * mu1, mu2 * mu2, mu1 * mu2
    s1 = conv(img1 * img1) - mu1_sq
    s2 = conv(img2 * img2) - mu2_sq
    s12 = conv(img1 * img2) - mu12
    C1, C2 = 0.01 ** 2, 0.03 ** 2
    m = (2 * mu12 + C1) * (2 * s12 + C2) / ((mu1_sq + mu2_sq + C1) * (s1 + s2 + C2))
    return 1.0 - (jnp.mean(m) if size_average else jnp.mean(m, axis=(1, 2, 3)))


# ----------------------------- main -------------------------------------------
if __name__ == "__main__":
    key = jax.random.PRNGKey(0)
    k1, k2 = jax.random.split(key)
    # small shapes: batch=2, channels=3 (module default), spatial=16
    img1 = jax.random.uniform(k1, (2, 3, 16, 16), dtype=jnp.float32)
    img2 = jax.random.uniform(k2, (2, 3, 16, 16), dtype=jnp.float32)

    # args.scales[0] = 4  ->  self.window_size = 8, padding = 4
    ssim = SSIM(scales=[4], window_size=8, n_channel=3, size_average=True)

    loss = ssim(img1, img2)
    loss = jax.block_until_ready(loss)

    ref = _ssim_ref(img1, img2, ssim.window, ssim.window_size, True)
    ref = jax.block_until_ready(ref)
    assert jnp.allclose(loss, ref, rtol=2e-5, atol=2e-5), (loss, ref)

    print("KERNEL_OK")
</pallas_src>

<mosaic_0001>
module attributes {stable_mosaic.version = 11 : i64} {
  func.func @_ssim_kernel(%arg0: i32, %arg1: memref<96x102xf32, #tpu.memory_space<vmem>>, %arg2: memref<120x80xf32, #tpu.memory_space<vmem>>, %arg3: memref<16x96xf32, #tpu.memory_space<vmem>>, %arg4: memref<16x96xf32, #tpu.memory_space<vmem>>, %arg5: memref<17x102xf32, #tpu.memory_space<vmem>>) attributes {dimension_semantics = [#tpu.dimension_semantics<arbitrary>], iteration_bounds = array<i64: 1>, scalar_prefetch = 0 : i64, scratch_operands = 0 : i64, tpu.core_type = #tpu.core_type<tc>, window_params = [{pipeline_mode = #tpu.pipeline_mode<synchronous>, transform_indices = @transform_0, window_bounds = array<i64: 96, 102>}, {pipeline_mode = #tpu.pipeline_mode<synchronous>, transform_indices = @transform_1, window_bounds = array<i64: 120, 80>}, {pipeline_mode = #tpu.pipeline_mode<synchronous>, transform_indices = @transform_2, window_bounds = array<i64: 16, 96>}, {pipeline_mode = #tpu.pipeline_mode<synchronous>, transform_indices = @transform_3, window_bounds = array<i64: 16, 96>}, {pipeline_mode = #tpu.pipeline_mode<synchronous>, transform_indices = @transform_4, window_bounds = array<i64: 17, 102>}]} {
    %c0 = arith.constant 0 : index
    %c0_0 = arith.constant 0 : index
    %0 = vector.load %arg3[%c0, %c0_0] : memref<16x96xf32, #tpu.memory_space<vmem>>, vector<16x96xf32>
    %c0_1 = arith.constant 0 : index
    %c0_2 = arith.constant 0 : index
    %1 = vector.load %arg4[%c0_1, %c0_2] : memref<16x96xf32, #tpu.memory_space<vmem>>, vector<16x96xf32>
    %2 = arith.mulf %0, %0 : vector<16x96xf32>
    %3 = arith.mulf %1, %1 : vector<16x96xf32>
    %4 = arith.mulf %0, %1 : vector<16x96xf32>
    %5 = tpu.concatenate %0, %1, %2, %3, %4 in 0 : vector<16x96xf32>, vector<16x96xf32>, vector<16x96xf32>, vector<16x96xf32>, vector<16x96xf32> -> vector<80x96xf32>
    %c0_3 = arith.constant 0 : index
    %c0_4 = arith.constant 0 : index
    %6 = vector.load %arg1[%c0_3, %c0_4] : memref<96x102xf32, #tpu.memory_space<vmem>>, vector<96x102xf32>
    %cst = arith.constant dense<0.000000e+00> : vector<80x102xf32>
    %7 = tpu.matmul %5, %6, %cst {dimension_numbers = #tpu.dot_dimension_numbers<[1], [0], [0], [1], [0, 0, 1, 1], [], []>} : vector<80x96xf32>, vector<96x102xf32>, vector<80x102xf32> -> vector<80x102xf32>
    %c0_5 = arith.constant 0 : index
    %c0_6 = arith.constant 0 : index
    %8 = vector.load %arg2[%c0_5, %c0_6] : memref<120x80xf32, #tpu.memory_space<vmem>>, vector<120x80xf32>
    %cst_7 = arith.constant dense<0.000000e+00> : vector<120x102xf32>
    %9 = tpu.matmul %8, %7, %cst_7 {dimension_numbers = #tpu.dot_dimension_numbers<[1], [0], [0], [1], [0, 0, 1, 1], [], []>} : vector<120x80xf32>, vector<80x102xf32>, vector<120x102xf32> -> vector<120x102xf32>
    %10 = vector.extract_strided_slice %9 {offsets = [0, 0], sizes = [17, 102], strides = [1, 1]} : vector<120x102xf32> to vector<17x102xf32>
    %11 = vector.extract_strided_slice %9 {offsets = [24, 0], sizes = [17, 102], strides = [1, 1]} : vector<120x102xf32> to vector<17x102xf32>
    %12 = vector.extract_strided_slice %9 {offsets = [48, 0], sizes = [17, 102], strides = [1, 1]} : vector<120x102xf32> to vector<17x102xf32>
    %13 = vector.extract_strided_slice %9 {offsets = [72, 0], sizes = [17, 102], strides = [1, 1]} : vector<120x102xf32> to vector<17x102xf32>
    %14 = vector.extract_strided_slice %9 {offsets = [96, 0], sizes = [17, 102], strides = [1, 1]} : vector<120x102xf32> to vector<17x102xf32>
    %15 = arith.mulf %10, %10 : vector<17x102xf32>
    %16 = arith.mulf %11, %11 : vector<17x102xf32>
    %17 = arith.mulf %10, %11 : vector<17x102xf32>
    %18 = arith.subf %12, %15 : vector<17x102xf32>
    %19 = arith.subf %13, %16 : vector<17x102xf32>
    %20 = arith.subf %14, %17 : vector<17x102xf32>
    %cst_8 = arith.constant 2.000000e+00 : f32
    %21 = vector.broadcast %cst_8 : f32 to vector<17x102xf32>
    %22 = arith.mulf %21, %17 : vector<17x102xf32>
    %cst_9 = arith.constant 9.99999974E-5 : f32
    %23 = vector.broadcast %cst_9 : f32 to vector<17x102xf32>
    %24 = arith.addf %22, %23 : vector<17x102xf32>
    %cst_10 = arith.constant 2.000000e+00 : f32
    %25 = vector.broadcast %cst_10 : f32 to vector<17x102xf32>
    %26 = arith.mulf %25, %20 : vector<17x102xf32>
    %cst_11 = arith.constant 8.99999984E-4 : f32
    %27 = vector.broadcast %cst_11 : f32 to vector<17x102xf32>
    %28 = arith.addf %26, %27 : vector<17x102xf32>
    %29 = arith.mulf %24, %28 : vector<17x102xf32>
    %30 = arith.addf %15, %16 : vector<17x102xf32>
    %cst_12 = arith.constant 9.99999974E-5 : f32
    %31 = vector.broadcast %cst_12 : f32 to vector<17x102xf32>
    %32 = arith.addf %30, %31 : vector<17x102xf32>
    %33 = arith.addf %18, %19 : vector<17x102xf32>
    %cst_13 = arith.constant 8.99999984E-4 : f32
    %34 = vector.broadcast %cst_13 : f32 to vector<17x102xf32>
    %35 = arith.addf %33, %34 : vector<17x102xf32>
    %36 = arith.mulf %32, %35 : vector<17x102xf32>
    %37 = tpu.reciprocal %36 : vector<17x102xf32> -> vector<17x102xf32>
    %38 = arith.mulf %29, %37 : vector<17x102xf32>
    %c0_14 = arith.constant 0 : index
    %c0_15 = arith.constant 0 : index
    %39 = vector.load %arg5[%c0_14, %c0_15] : memref<17x102xf32, #tpu.memory_space<vmem>>, vector<17x102xf32>
    tpu.vector_store %arg5[%c0_14, %c0_15], %38 {strides = array<i32>} : memref<17x102xf32, #tpu.memory_space<vmem>>, vector<17x102xf32>,
    return
  }
  func.func @transform_0(%arg0: i32) -> (i32, i32) {
    %c0_i32 = arith.constant 0 : i32
    %c0_i32_0 = arith.constant 0 : i32
    %c0_i32_1 = arith.constant 0 : i32
    return %c0_i32, %c0_i32_0 : i32, i32
  }
  func.func @transform_1(%arg0: i32) -> (i32, i32) {
    %c0_i32 = arith.constant 0 : i32
    %c0_i32_0 = arith.constant 0 : i32
    %c0_i32_1 = arith.constant 0 : i32
    return %c0_i32, %c0_i32_0 : i32, i32
  }
  func.func @transform_2(%arg0: i32) -> (i32, i32) {
    %c0_i32 = arith.constant 0 : i32
    %c0_i32_0 = arith.constant 0 : i32
    %c0_i32_1 = arith.constant 0 : i32
    return %c0_i32, %c0_i32_0 : i32, i32
  }
  func.func @transform_3(%arg0: i32) -> (i32, i32) {
    %c0_i32 = arith.constant 0 : i32
    %c0_i32_0 = arith.constant 0 : i32
    %c0_i32_1 = arith.constant 0 : i32
    return %c0_i32, %c0_i32_0 : i32, i32
  }
  func.func @transform_4(%arg0: i32) -> (i32, i32) {
    %c0_i32 = arith.constant 0 : i32
    %c0_i32_0 = arith.constant 0 : i32
    %c0_i32_1 = arith.constant 0 : i32
    return %c0_i32, %c0_i32_0 : i32, i32
  }
}

</mosaic_0001>

<llo_original>
// kernel: tpu_custom_call.1
$region0: #{tpu_custom_call.1}
  #allocation0 [shape = 'u32[]', space=smem, size = 0x4, offset = 0x4, fixed_abs, tag = 'smem constant byte address 0x4 - core index']
  #allocation1 [shape = 'u32[72,128]{1,0:T(1,128)}', space=vmem, size = 0x9000, scoped, tag = 'internal scratch']
  %s0 = inlined_call_operand.vmem [shape: f32[96,102], index: 0, kind: input, shape index: {}]
  %s1 = inlined_call_operand.vmem [shape: f32[120,80], index: 1, kind: input, shape index: {}]
  %s2 = inlined_call_operand.vmem [shape: f32[16,96], index: 2, kind: input, shape index: {}]
  %s3 = inlined_call_operand.vmem [shape: f32[16,96], index: 3, kind: input, shape index: {}]
  %s4 = inlined_call_operand.hbm [shape: f32[17,102], index: 4, kind: output, shape index: {}]
  %s5 = sld [smem:[#allocation0]]
  $region26: #{tpu_custom_call.1} parent=0
    _
  %s7 = ssub.s32 1, %s5
  %s8 = scalar_select 0, %s7, %s5
  $region1: #{tpu_custom_call.1} parent=0
    #allocation2 [shape = 'u8[12288]{0}', space=vmem, size = 0x3000, scoped, tag = 'output window, operand 0, single buffered']
    #allocation3 [shape = 's32[1]{0}', space=sflag, size = 0x4, scoped, tag = 'scoped memory for tpu_custom_call.1']
    %9 = vsyncpa [#allocation3], 0
    // Predicated region
    $region2: #{tpu_custom_call.1} parent=1 // pred_check
      _
    $region3: #{tpu_custom_call.1} parent=1 // pred_check_branch
      %11 = sbr.rel (0) target = $region5
    $region4: #{tpu_custom_call.1} parent=1 // pred_region
      _
    $region5: #{tpu_custom_call.1} parent=1 // pred_fallthru
      _
    // Predicated region
    $region6: #{tpu_custom_call.1} parent=1 // pred_check
      _
    $region7: #{tpu_custom_call.1} parent=1 // pred_check_branch
      %13 = sbr.rel (0) target = $region9
    $region8: #{tpu_custom_call.1} parent=1 // pred_region
      _
    $region9: #{tpu_custom_call.1} parent=1 // pred_fallthru
      _
    // Predicated region
    $region10: #{tpu_custom_call.1} parent=1 // pred_check
      _
    $region11: #{tpu_custom_call.1} parent=1 // pred_check_branch
      %15 = sbr.rel (0) target = $region13
    $region12: #{tpu_custom_call.1} parent=1 // pred_region
      _
    $region13: #{tpu_custom_call.1} parent=1 // pred_fallthru
      _
    // Predicated region
    $region14: #{tpu_custom_call.1} parent=1 // pred_check
      _
    $region15: #{tpu_custom_call.1} parent=1 // pred_check_branch
      %17 = sbr.rel (0) target = $region17
    $region16: #{tpu_custom_call.1} parent=1 // pred_region
      _
    $region17: #{tpu_custom_call.1} parent=1 // pred_fallthru
      _
    %v18 = vld [vmem:[%s2] sm:$0xff]
    %v19 = vld [vmem:[%s2 + $0x8] sm:$0xff]
    %v20 = vld [vmem:[%s3] sm:$0xff]
    %v21 = vld [vmem:[%s3 + $0x8] sm:$0xff]
    %v22 = vmul.f32 %v18, %v18
    %v23 = vmul.f32 %v19, %v19
    %v24 = vmul.f32 %v20, %v20
    %v25 = vmul.f32 %v21, %v21
    %v26 = vmul.f32 %v18, %v20
    %v27 = vmul.f32 %v19, %v21
    %v28 = vld [vmem:[%s0] sm:$0xff]
    %v29 = vld [vmem:[%s0 + $0x8] sm:$0xff]
    %v30 = vld [vmem:[%s0 + $0x10] sm:$0xff]
    %v31 = vld [vmem:[%s0 + $0x18] sm:$0xff]
    %v32 = vld [vmem:[%s0 + $0x20] sm:$0xff]
    %v33 = vld [vmem:[%s0 + $0x28] sm:$0xff]
    %v34 = vld [vmem:[%s0 + $0x30] sm:$0xff]
    %v35 = vld [vmem:[%s0 + $0x38] sm:$0xff]
    %v36 = vld [vmem:[%s0 + $0x40] sm:$0xff]
    %v37 = vld [vmem:[%s0 + $0x48] sm:$0xff]
    %v38 = vld [vmem:[%s0 + $0x50] sm:$0xff]
    %v39 = vld [vmem:[%s0 + $0x58] sm:$0xff]
    %vm40 = vcmask 785408
    %v42 = vsel %vm40, %v18, 0
    %v45 = vsel %vm40, %v19, 0
    %v48 = vsel %vm40, %v20, 0
    %v51 = vsel %vm40, %v21, 0
    %v54 = vsel %vm40, %v22, 0
    %v57 = vsel %vm40, %v23, 0
    %v60 = vsel %vm40, %v24, 0
    %v63 = vsel %vm40, %v25, 0
    %v66 = vsel %vm40, %v26, 0
    %v69 = vsel %vm40, %v27, 0
    %71 = vmatpush.msra.mxu0 0.0
    %72 = vmatpush.msra.mxu0 0.0
    %73 = vmatpush.msra.mxu0 0.0
    %74 = vmatpush.msra.mxu0 0.0
    %75 = vmatpush.msra.mxu0 %v39
    %76 = vmatpush.msra.mxu0 %v38
    %77 = vmatpush.msra.mxu0 %v37
    %78 = vmatpush.msra.mxu0 %v36
    %79 = vmatpush.msra.mxu0 %v35
    %80 = vmatpush.msra.mxu0 %v34
    %81 = vmatpush.msra.mxu0 %v33
    %82 = vmatpush.msra.mxu0 %v32
    %83 = vmatpush.msra.mxu0 %v31
    %84 = vmatpush.msra.mxu0 %v30
    %85 = vmatpush.msra.mxu0 %v29
    %86 = vmatpush.msra.mxu0 %v28
    %87 = vmatmul.f32.gmra.mxu0 %v42
    %v88 = vpop.f32.mrf.mxu0
    %v89 = vadd.f32 0.0, %v88
    %90 = vmatmul.f32.gmra.mxu0 %v45
    %v91 = vpop.f32.mrf.mxu0
    %v92 = vadd.f32 0.0, %v91
    %93 = vmatmul.f32.gmra.mxu0 %v48
    %v94 = vpop.f32.mrf.mxu0
    %v95 = vadd.f32 0.0, %v94
    %96 = vmatmul.f32.gmra.mxu0 %v51
    %v97 = vpop.f32.mrf.mxu0
    %v98 = vadd.f32 0.0, %v97
    %99 = vmatmul.f32.gmra.mxu0 %v54
    %v100 = vpop.f32.mrf.mxu0
    %v101 = vadd.f32 0.0, %v100
    %102 = vmatmul.f32.gmra.mxu0 %v57
    %v103 = vpop.f32.mrf.mxu0
    %v104 = vadd.f32 0.0, %v103
    %105 = vmatmul.f32.gmra.mxu0 %v60
    %v106 = vpop.f32.mrf.mxu0
    %v107 = vadd.f32 0.0, %v106
    %108 = vmatmul.f32.gmra.mxu0 %v63
    %v109 = vpop.f32.mrf.mxu0
    %v110 = vadd.f32 0.0, %v109
    %111 = vmatmul.f32.gmra.mxu0 %v66
    %v112 = vpop.f32.mrf.mxu0
    %v113 = vadd.f32 0.0, %v112
    %114 = vmatmul.f32.gmra.mxu0 %v69
    %v115 = vpop.f32.mrf.mxu0
    %v116 = vadd.f32 0.0, %v115
    %117 = vdwg.mxu0
    %v118 = vld [vmem:[%s1] sm:$0xff]
    %v119 = vld [vmem:[%s1 + $0x8] sm:$0xff]
    %v120 = vld [vmem:[%s1 + $0x10] sm:$0xff]
    %v121 = vld [vmem:[%s1 + $0x18] sm:$0xff]
    %v122 = vld [vmem:[%s1 + $0x20] sm:$0xff]
    %v123 = vld [vmem:[%s1 + $0x28] sm:$0xff]
    %v124 = vld [vmem:[%s1 + $0x30] sm:$0xff]
    %v125 = vld [vmem:[%s1 + $0x38] sm:$0xff]
    %v126 = vld [vmem:[%s1 + $0x40] sm:$0xff]
    %v127 = vld [vmem:[%s1 + $0x48] sm:$0xff]
    %v128 = vld [vmem:[%s1 + $0x50] sm:$0xff]
    %v129 = vld [vmem:[%s1 + $0x58] sm:$0xff]
    %v130 = vld [vmem:[%s1 + $0x60] sm:$0xff]
    %v131 = vld [vmem:[%s1 + $0x68] sm:$0xff]
    %v132 = vld [vmem:[%s1 + $0x70] sm:$0xff]
    %vm133 = vcmask 654336
    %v135 = vsel %vm133, %v118, 0
    %v138 = vsel %vm133, %v119, 0
    %v141 = vsel %vm133, %v120, 0
    %v144 = vsel %vm133, %v121, 0
    %v147 = vsel %vm133, %v122, 0
    %v150 = vsel %vm133, %v123, 0
    %v153 = vsel %vm133, %v124, 0
    %v156 = vsel %vm133, %v125, 0
    %v159 = vsel %vm133, %v126, 0
    %v162 = vsel %vm133, %v127, 0
    %v165 = vsel %vm133, %v128, 0
    %v168 = vsel %vm133, %v129, 0
    %v171 = vsel %vm133, %v130, 0
    %v174 = vsel %vm133, %v131, 0
    %v177 = vsel %vm133, %v132, 0
    %179 = vmatpush.msra.mxu0 0.0
    %180 = vmatpush.msra.mxu0 0.0
    %181 = vmatpush.msra.mxu0 0.0
    %182 = vmatpush.msra.mxu0 0.0
    %183 = vmatpush.msra.mxu0 0.0
    %184 = vmatpush.msra.mxu0 0.0
    %185 = vmatpush.msra.mxu0 %v116
    %186 = vmatpush.msra.mxu0 %v113
    %187 = vmatpush.msra.mxu0 %v110
    %188 = vmatpush.msra.mxu0 %v107
    %189 = vmatpush.msra.mxu0 %v104
    %190 = vmatpush.msra.mxu0 %v101
    %191 = vmatpush.msra.mxu0 %v98
    %192 = vmatpush.msra.mxu0 %v95
    %193 = vmatpush.msra.mxu0 %v92
    %194 = vmatpush.msra.mxu0 %v89
    %195 = vmatmul.f32.gmra.mxu0 %v135
    %v196 = vpop.f32.mrf.mxu0
    %v197 = vadd.f32 0.0, %v196
    %198 = vmatmul.f32.gmra.mxu0 %v138
    %v199 = vpop.f32.mrf.mxu0
    %v200 = vadd.f32 0.0, %v199
    %201 = vmatmul.f32.gmra.mxu0 %v141
    %v202 = vpop.f32.mrf.mxu0
    %v203 = vadd.f32 0.0, %v202
    %204 = vmatmul.f32.gmra.mxu0 %v144
    %v205 = vpop.f32.mrf.mxu0
    %v206 = vadd.f32 0.0, %v205
    %207 = vmatmul.f32.gmra.mxu0 %v147
    %v208 = vpop.f32.mrf.mxu0
    %v209 = vadd.f32 0.0, %v208
    %210 = vmatmul.f32.gmra.mxu0 %v150
    %v211 = vpop.f32.mrf.mxu0
    %v212 = vadd.f32 0.0, %v211
    %213 = vmatmul.f32.gmra.mxu0 %v153
    %v214 = vpop.f32.mrf.mxu0
    %v215 = vadd.f32 0.0, %v214
    %216 = vmatmul.f32.gmra.mxu0 %v156
    %v217 = vpop.f32.mrf.mxu0
    %v218 = vadd.f32 0.0, %v217
    %219 = vmatmul.f32.gmra.mxu0 %v159
    %v220 = vpop.f32.mrf.mxu0
    %v221 = vadd.f32 0.0, %v220
    %222 = vmatmul.f32.gmra.mxu0 %v162
    %v223 = vpop.f32.mrf.mxu0
    %v224 = vadd.f32 0.0, %v223
    %225 = vmatmul.f32.gmra.mxu0 %v165
    %v226 = vpop.f32.mrf.mxu0
    %v227 = vadd.f32 0.0, %v226
    %228 = vmatmul.f32.gmra.mxu0 %v168
    %v229 = vpop.f32.mrf.mxu0
    %v230 = vadd.f32 0.0, %v229
    %231 = vmatmul.f32.gmra.mxu0 %v171
    %v232 = vpop.f32.mrf.mxu0
    %v233 = vadd.f32 0.0, %v232
    %234 = vmatmul.f32.gmra.mxu0 %v174
    %v235 = vpop.f32.mrf.mxu0
    %v236 = vadd.f32 0.0, %v235
    %237 = vmatmul.f32.gmra.mxu0 %v177
    %v238 = vpop.f32.mrf.mxu0
    %v239 = vadd.f32 0.0, %v238
    %240 = vdwg.mxu0
    %v241 = vmul.f32 %v197, %v197
    %v242 = vmul.f32 %v200, %v200
    %v243 = vmul.f32 %v203, %v203
    %v244 = vmul.f32 %v206, %v206
    %v245 = vmul.f32 %v209, %v209
    %v246 = vmul.f32 %v212, %v212
    %v247 = vmul.f32 %v197, %v206
    %v248 = vmul.f32 %v200, %v209
    %v249 = vmul.f32 %v203, %v212
    %v250 = vsub.f32 %v215, %v241
    %v251 = vsub.f32 %v218, %v242
    %v252 = vsub.f32 %v221, %v243
    %v253 = vsub.f32 %v224, %v244
    %v254 = vsub.f32 %v227, %v245
    %v255 = vsub.f32 %v230, %v246
    %v256 = vsub.f32 %v233, %v247
    %v257 = vsub.f32 %v236, %v248
    %v258 = vsub.f32 %v239, %v249
    %v259 = vmul.f32 %v247, 2.0
    %v260 = vmul.f32 %v248, 2.0
    %v261 = vmul.f32 %v249, 2.0
    %v262 = vadd.f32 %v259, 0.0001
    %v263 = vadd.f32 %v260, 0.0001
    %v264 = vadd.f32 %v261, 0.0001
    %v265 = vmul.f32 %v256, 2.0
    %v266 = vmul.f32 %v257, 2.0
    %v267 = vmul.f32 %v258, 2.0
    %v268 = vadd.f32 %v265, 0.0009
    %v269 = vadd.f32 %v266, 0.0009
    %v270 = vadd.f32 %v267, 0.0009
    %v271 = vmul.f32 %v262, %v268
    %v272 = vmul.f32 %v263, %v269
    %v273 = vmul.f32 %v264, %v270
    %v274 = vadd.f32 %v241, %v244
    %v275 = vadd.f32 %v242, %v245
    %v276 = vadd.f32 %v243, %v246
    %v277 = vadd.f32 %v274, 0.0001
    %v278 = vadd.f32 %v275, 0.0001
    %v279 = vadd.f32 %v276, 0.0001
    %v280 = vadd.f32 %v250, %v253
    %v281 = vadd.f32 %v251, %v254
    %v282 = vadd.f32 %v252, %v255
    %v283 = vadd.f32 %v280, 0.0009
    %v284 = vadd.f32 %v281, 0.0009
    %v285 = vadd.f32 %v282, 0.0009
    %v286 = vmul.f32 %v277, %v283
    %v287 = vmul.f32 %v278, %v284
    %v288 = vmul.f32 %v279, %v285
    %v289 = vrcp.pop %v286
    %v290 = vmul.f32 %v286, %v289
    %v291 = vsub.f32 1.0, %v290
    %v292 = vmul.f32 %v289, %v291
    %v293 = vadd.f32 %v289, %v292
    %vm294 = vweird.f32 %v286
    %vm295 = vweird.f32 %v289
    %vm296 = vmor %vm294, %vm295
    %v297 = vsel %vm296, %v289, %v293
    %v298 = vand.u32 2147483647, %v286
    %vm299 = vcmp.eq.f32.partialorder %v298, 8.507059e+37
    %v300 = vand.u32 %v286, 2147483648
    %v301 = vor.u32 1.1754944e-38, %v300
    %v302 = vsel %vm299, %v301, %v297
    %v303 = vrcp.pop %v287
    %v304 = vmul.f32 %v287, %v303
    %v305 = vsub.f32 1.0, %v304
    %v306 = vmul.f32 %v303, %v305
    %v307 = vadd.f32 %v303, %v306
    %vm308 = vweird.f32 %v287
    %vm309 = vweird.f32 %v303
    %vm310 = vmor %vm308, %vm309
    %v311 = vsel %vm310, %v303, %v307
    %v312 = vand.u32 2147483647, %v287
    %vm313 = vcmp.eq.f32.partialorder %v312, 8.507059e+37
    %v314 = vand.u32 %v287, 2147483648
    %v315 = vor.u32 1.1754944e-38, %v314
    %v316 = vsel %vm313, %v315, %v311
    %v317 = vrcp.pop %v288
    %v318 = vmul.f32 %v288, %v317
    %v319 = vsub.f32 1.0, %v318
    %v320 = vmul.f32 %v317, %v319
    %v321 = vadd.f32 %v317, %v320
    %vm322 = vweird.f32 %v288
    %vm323 = vweird.f32 %v317
    %vm324 = vmor %vm322, %vm323
    %v325 = vsel %vm324, %v317, %v321
    %v326 = vand.u32 2147483647, %v288
    %vm327 = vcmp.eq.f32.partialorder %v326, 8.507059e+37
    %v328 = vand.u32 %v288, 2147483648
    %v329 = vor.u32 1.1754944e-38, %v328
    %v330 = vsel %vm327, %v329, %v325
    %v331 = vmul.f32 %v271, %v302
    %v332 = vmul.f32 %v272, %v316
    %v333 = vmul.f32 %v273, %v330
    %vm334 = vcmask 834560
    %335 = vst.msk [vmem:[#allocation2] sm:$0xff] %vm334, %v331
    %336 = vst.msk [vmem:[#allocation2 + $0x8] sm:$0xff] %vm334, %v332
    %vm337 = vcmask 827392
    %338 = vst.msk [vmem:[#allocation2 + $0x10] sm:$0x1] %vm337, %v333
    // Predicated region
    $region18: #{tpu_custom_call.1} parent=1 // pred_check
      _
    $region19: #{tpu_custom_call.1} parent=1 // pred_check_branch
      %340 = sbr.rel (0) target = $region21
    $region20: #{tpu_custom_call.1} parent=1 // pred_region
      %342 = vsyncadd [#allocation3], 0
      %s343 = sshll.u32 [#allocation2], 4
      %s344 = int_to_ptr.vmem [resolvable:$true] %s343
      %s345 = sshll.u32 %s4, 4
      %s346 = int_to_ptr.hbm [resolvable:$true] %s345
      %351 = dma.vmem_to_hbm [thread:$0]  %s344, 384, %s346, [#allocation3], 128, 128, 8
    $region21: #{tpu_custom_call.1} parent=1 // pred_fallthru
      _
    // Predicated region
    $region22: #{tpu_custom_call.1} parent=1 // pred_check
      _
    $region23: #{tpu_custom_call.1} parent=1 // pred_check_branch
      %353 = sbr.rel (0) target = $region25
    $region24: #{tpu_custom_call.1} parent=1 // pred_region
      %355 = dma.done [#allocation3], 384
    $region25: #{tpu_custom_call.1} parent=1 // pred_fallthru
      _
    %356 = vsyncpa [#allocation3], 1

</llo_original>
